<compile_context>
chip_gen: v6e
topology: v6e:2x2x1
jax: 0.10.0
libtpu: 0.0.40
codegen_flags: <defaults>
</compile_context>

<pallas_src>
import functools

import jax
import jax.numpy as jnp
from jax import lax
from jax.experimental import pallas as pl
from jax.experimental.pallas import tpu as pltpu


def _make_mlp_kernel(subtile):
    """Builds the fused MLP kernel for a given inner lane sub-tile width."""

    def mlp_kernel(x_ref, w1_ref, b1_ref, w2_ref, b2_ref, w3_ref, b3_ref, o_ref):
        # Resident weights / biases (tiny; same block every grid step).
        w1 = w1_ref[...]      # [16, 2]  (PyTorch [out, in])
        b1 = b1_ref[...]      # [16, 1]
        w2 = w2_ref[...]      # [16, 16]
        b2 = b2_ref[...]      # [16, 1]
        w3 = w3_ref[...]      # [16, 1]  (layer-3 weight as a column)
        b3 = b3_ref[...]      # [1, 1]

        n_sub = x_ref.shape[1] // subtile

        def body(s, carry):
            start = pl.multiple_of(s * subtile, subtile)
            x = x_ref[:, pl.ds(start, subtile)]                        # [2, ST]

            # Layer 1 (K=2): two broadcast multiply-adds on the VPU.
            h1 = w1[:, 0:1] * x[0:1, :] + w1[:, 1:2] * x[1:2, :] + b1  # [16, ST]
            h1 = jnp.maximum(h1, 0.0)

            # Layer 2: 16x16 contraction on the MXU, full-f32 passes.
            h2 = jnp.dot(w2, h1,
                         preferred_element_type=jnp.float32,
                         precision=lax.Precision.HIGHEST)              # [16, ST]
            h2 = jnp.maximum(h2 + b2, 0.0)

            # Layer 3 (M=1): broadcast multiply + 16-term sublane reduce.
            out = jnp.sum(w3 * h2, axis=0, keepdims=True) + b3         # [1, ST]
            o_ref[:, pl.ds(start, subtile)] = out.astype(o_ref.dtype)
            return carry

        lax.fori_loop(0, n_sub, body, 0, unroll=True)

    return mlp_kernel


def _choose_tiles(batch, max_tile):
    """Pick (lane tile TB, padded batch, inner compute sub-tile)."""
    n128 = pl.cdiv(batch, 128)                 # number of 128-lane chunks needed
    max_chunks = max(max_tile // 128, 1)
    if n128 >= 2:
        # Keep >= 2 grid steps so the "parallel" batch axis can use both
        # v7x TensorCores; still take the biggest tile allowed otherwise.
        chunks = min(max_chunks, pl.cdiv(n128, 2))
    else:
        chunks = 1
    tb = 128 * chunks
    n_tiles = pl.cdiv(n128, chunks)
    b_pad = tb * n_tiles
    # Inner sub-tile: 512 lanes preferred (keeps h1/h2 in ~16-24 vregs),
    # falling back to the largest multiple of 128 that divides TB.
    st = min(512, tb)
    while tb % st:
        st -= 128
    return tb, b_pad, st


def mlp_forward_fm(xt, params, *, max_tile=16384):
    """Feature-major core: xt [2, B] float32 -> [1, B] float32 (no transposes)."""
    B = xt.shape[1]
    TB, B_pad, ST = _choose_tiles(B, max_tile)
    if B_pad != B:
        xt = jnp.pad(xt, ((0, 0), (0, B_pad - B)))

    w1 = params["w1"]                   # [16, 2]
    b1 = params["b1"]                   # [16, 1]
    w2 = params["w2"]                   # [16, 16]
    b2 = params["b2"]                   # [16, 1]
    w3c = params["w3"].reshape(16, 1)   # [1, 16] -> [16, 1] column
    b3 = params["b3"]                   # [1, 1]

    resident = lambda shape: pl.BlockSpec(shape, lambda i: (0, 0))

    out = pl.pallas_call(
        _make_mlp_kernel(ST),
        out_shape=jax.ShapeDtypeStruct((1, B_pad), jnp.float32),
        grid=(B_pad // TB,),
        in_specs=[
            pl.BlockSpec((2, TB), lambda i: (0, i)),   # x tile (pipelined)
            resident((16, 2)),                          # w1
            resident((16, 1)),                          # b1
            resident((16, 16)),                         # w2
            resident((16, 1)),                          # b2
            resident((16, 1)),                          # w3 column
            resident((1, 1)),                           # b3
        ],
        out_specs=pl.BlockSpec((1, TB), lambda i: (0, i)),
        compiler_params=pltpu.CompilerParams(
            dimension_semantics=("parallel",)),
    )(xt, w1, b1, w2, b2, w3c, b3)

    return out[:, :B]


@functools.partial(jax.jit, static_argnames=("max_tile",))
def mlp_forward(x, params, *, max_tile=16384):
    """PyTorch-contract wrapper: x [B, 2] float32 -> [B, 1] float32.

    Jitted so the layout plumbing (transpose/pad/slice) fuses with surrounding
    XLA ops; prefer mlp_forward_fm if the caller can supply [2, B] directly.
    """
    return mlp_forward_fm(x.T, params, max_tile=max_tile).T


def init_params(key):
    """PyTorch-native shapes: W [out, in]; biases stored 2-D as columns."""
    k1, k2, k3, k4, k5, k6 = jax.random.split(key, 6)

    def uniform(k, shape, fan_in):
        bound = 1.0 / jnp.sqrt(fan_in)
        return jax.random.uniform(k, shape, jnp.float32, -bound, bound)

    return {
        "w1": uniform(k1, (16, 2), 2.0),
        "b1": uniform(k2, (16, 1), 2.0),
        "w2": uniform(k3, (16, 16), 16.0),
        "b2": uniform(k4, (16, 1), 16.0),
        "w3": uniform(k5, (1, 16), 16.0),
        "b3": uniform(k6, (1, 1), 16.0),
    }


def mlp_reference(x, params):
    """Plain-JAX reference in PyTorch layout: x [B, 2] -> [B, 1]."""
    h1 = jnp.maximum(x @ params["w1"].T + params["b1"].T, 0.0)
    h2 = jnp.maximum(h1 @ params["w2"].T + params["b2"].T, 0.0)
    return h2 @ params["w3"].T + params["b3"].T


if __name__ == "__main__":
    key = jax.random.PRNGKey(0)
    k_params, k_x1, k_x2 = jax.random.split(key, 3)

    params = init_params(k_params)

    # Small batch (module-sized example): batch=8, in_features=2.
    x_small = jax.random.normal(k_x1, (8, 2), jnp.float32)
    out_small = jax.block_until_ready(mlp_forward(x_small, params))
    ref_small = mlp_reference(x_small, params)
    assert out_small.shape == (8, 1), out_small.shape
    assert jnp.allclose(out_small, ref_small, atol=1e-5, rtol=1e-5), "mismatch (small)"

    # Larger batch to exercise the multi-step pipelined grid (2 tiles of 2048,
    # each walked in 512-lane sub-slices inside the kernel).
    x_big = jax.random.normal(k_x2, (4096, 2), jnp.float32)
    out_big = jax.block_until_ready(mlp_forward(x_big, params))
    ref_big = mlp_reference(x_big, params)
    assert out_big.shape == (4096, 1), out_big.shape
    assert jnp.allclose(out_big, ref_big, atol=1e-5, rtol=1e-5), "mismatch (big)"

    print("KERNEL_OK")
</pallas_src>

<mosaic_0001>
module attributes {stable_mosaic.version = 11 : i64} {
  func.func @mlp_kernel(%arg0: i32, %arg1: memref<2x128xf32, #tpu.memory_space<vmem>>, %arg2: memref<16x2xf32, #tpu.memory_space<vmem>>, %arg3: memref<16x1xf32, #tpu.memory_space<vmem>>, %arg4: memref<16x16xf32, #tpu.memory_space<vmem>>, %arg5: memref<16x1xf32, #tpu.memory_space<vmem>>, %arg6: memref<16x1xf32, #tpu.memory_space<vmem>>, %arg7: memref<1x1xf32, #tpu.memory_space<vmem>>, %arg8: memref<1x128xf32, #tpu.memory_space<vmem>>) attributes {dimension_semantics = [#tpu.dimension_semantics<parallel>], iteration_bounds = array<i64: 1>, scalar_prefetch = 0 : i64, scratch_operands = 0 : i64, tpu.core_type = #tpu.core_type<tc>, window_params = [{transform_indices = @transform_0, window_bounds = array<i64: 2, 128>}, {pipeline_mode = #tpu.pipeline_mode<synchronous>, transform_indices = @transform_1, window_bounds = array<i64: 16, 2>}, {pipeline_mode = #tpu.pipeline_mode<synchronous>, transform_indices = @transform_2, window_bounds = array<i64: 16, 1>}, {pipeline_mode = #tpu.pipeline_mode<synchronous>, transform_indices = @transform_3, window_bounds = array<i64: 16, 16>}, {pipeline_mode = #tpu.pipeline_mode<synchronous>, transform_indices = @transform_4, window_bounds = array<i64: 16, 1>}, {pipeline_mode = #tpu.pipeline_mode<synchronous>, transform_indices = @transform_5, window_bounds = array<i64: 16, 1>}, {pipeline_mode = #tpu.pipeline_mode<synchronous>, transform_indices = @transform_6, window_bounds = array<i64: 1, 1>}, {transform_indices = @transform_7, window_bounds = array<i64: 1, 128>}]} {
    %c0 = arith.constant 0 : index
    %c0_0 = arith.constant 0 : index
    %0 = vector.load %arg2[%c0, %c0_0] : memref<16x2xf32, #tpu.memory_space<vmem>>, vector<16x2xf32>
    %c0_1 = arith.constant 0 : index
    %c0_2 = arith.constant 0 : index
    %1 = vector.load %arg3[%c0_1, %c0_2] : memref<16x1xf32, #tpu.memory_space<vmem>>, vector<16x1xf32>
    %c0_3 = arith.constant 0 : index
    %c0_4 = arith.constant 0 : index
    %2 = vector.load %arg4[%c0_3, %c0_4] : memref<16x16xf32, #tpu.memory_space<vmem>>, vector<16x16xf32>
    %c0_5 = arith.constant 0 : index
    %c0_6 = arith.constant 0 : index
    %3 = vector.load %arg5[%c0_5, %c0_6] : memref<16x1xf32, #tpu.memory_space<vmem>>, vector<16x1xf32>
    %c0_7 = arith.constant 0 : index
    %c0_8 = arith.constant 0 : index
    %4 = vector.load %arg6[%c0_7, %c0_8] : memref<16x1xf32, #tpu.memory_space<vmem>>, vector<16x1xf32>
    %c0_9 = arith.constant 0 : index
    %c0_10 = arith.constant 0 : index
    %5 = vector.load %arg7[%c0_9, %c0_10] : memref<1x1xf32, #tpu.memory_space<vmem>>, vector<1x1xf32>
    %c0_i32 = arith.constant 0 : i32
    %c128_i32 = arith.constant 128 : i32
    %6 = arith.muli %c0_i32, %c128_i32 : i32
    %7 = tpu.assume_multiple %6, 128 : i32
    %c0_11 = arith.constant 0 : index
    %8 = arith.index_cast %7 : i32 to index
    %9 = vector.load %arg1[%c0_11, %8] : memref<2x128xf32, #tpu.memory_space<vmem>>, vector<2x128xf32>
    %10 = vector.extract_strided_slice %0 {offsets = [0, 0], sizes = [16, 1], strides = [1, 1]} : vector<16x2xf32> to vector<16x1xf32>
    %11 = vector.extract_strided_slice %9 {offsets = [0, 0], sizes = [1, 128], strides = [1, 1]} : vector<2x128xf32> to vector<1x128xf32>
    %12 = vector.broadcast %10 : vector<16x1xf32> to vector<16x128xf32>
    %13 = vector.broadcast %11 : vector<1x128xf32> to vector<16x128xf32>
    %14 = arith.mulf %12, %13 : vector<16x128xf32>
    %15 = vector.extract_strided_slice %0 {offsets = [0, 1], sizes = [16, 1], strides = [1, 1]} : vector<16x2xf32> to vector<16x1xf32>
    %16 = vector.extract_strided_slice %9 {offsets = [1, 0], sizes = [1, 128], strides = [1, 1]} : vector<2x128xf32> to vector<1x128xf32>
    %17 = vector.broadcast %15 : vector<16x1xf32> to vector<16x128xf32>
    %18 = vector.broadcast %16 : vector<1x128xf32> to vector<16x128xf32>
    %19 = arith.mulf %17, %18 : vector<16x128xf32>
    %20 = arith.addf %14, %19 : vector<16x128xf32>
    %21 = vector.broadcast %1 : vector<16x1xf32> to vector<16x128xf32>
    %22 = arith.addf %20, %21 : vector<16x128xf32>
    %cst = arith.constant 0.000000e+00 : f32
    %23 = vector.broadcast %cst : f32 to vector<16x128xf32>
    %24 = arith.maximumf %22, %23 : vector<16x128xf32>
    %cst_12 = arith.constant dense<0.000000e+00> : vector<16x128xf32>
    %25 = tpu.matmul %2, %24, %cst_12 {dimension_numbers = #tpu.dot_dimension_numbers<[1], [0], [0], [1], [0, 0, 1, 1], [], []>, precision = #tpu.contract_precision<fp32>} : vector<16x16xf32>, vector<16x128xf32>, vector<16x128xf32> -> vector<16x128xf32>
    %26 = vector.broadcast %3 : vector<16x1xf32> to vector<16x128xf32>
    %27 = arith.addf %25, %26 : vector<16x128xf32>
    %cst_13 = arith.constant 0.000000e+00 : f32
    %28 = vector.broadcast %cst_13 : f32 to vector<16x128xf32>
    %29 = arith.maximumf %27, %28 : vector<16x128xf32>
    %30 = vector.broadcast %4 : vector<16x1xf32> to vector<16x128xf32>
    %31 = arith.mulf %30, %29 : vector<16x128xf32>
    %cst_14 = arith.constant dense<0.000000e+00> : vector<128xf32>
    %32 = vector.multi_reduction <add>, %31, %cst_14 [0] : vector<16x128xf32> to vector<128xf32>
    %33 = vector.shape_cast %32 : vector<128xf32> to vector<1x128xf32>
    %34 = vector.broadcast %5 : vector<1x1xf32> to vector<1x128xf32>
    %35 = arith.addf %33, %34 : vector<1x128xf32>
    %c0_15 = arith.constant 0 : index
    %36 = arith.index_cast %7 : i32 to index
    %37 = vector.load %arg8[%c0_15, %36] : memref<1x128xf32, #tpu.memory_space<vmem>>, vector<1x128xf32>
    tpu.vector_store %arg8[%c0_15, %36], %35 {strides = array<i32>} : memref<1x128xf32, #tpu.memory_space<vmem>>, vector<1x128xf32>,
    %c1_i32 = arith.constant 1 : i32
    return
  }
  func.func @transform_0(%arg0: i32) -> (i32, i32) {
    %c0_i32 = arith.constant 0 : i32
    %c0_i32_0 = arith.constant 0 : i32
    return %c0_i32, %arg0 : i32, i32
  }
  func.func @transform_1(%arg0: i32) -> (i32, i32) {
    %c0_i32 = arith.constant 0 : i32
    %c0_i32_0 = arith.constant 0 : i32
    %c0_i32_1 = arith.constant 0 : i32
    return %c0_i32, %c0_i32_0 : i32, i32
  }
  func.func @transform_2(%arg0: i32) -> (i32, i32) {
    %c0_i32 = arith.constant 0 : i32
    %c0_i32_0 = arith.constant 0 : i32
    %c0_i32_1 = arith.constant 0 : i32
    return %c0_i32, %c0_i32_0 : i32, i32
  }
  func.func @transform_3(%arg0: i32) -> (i32, i32) {
    %c0_i32 = arith.constant 0 : i32
    %c0_i32_0 = arith.constant 0 : i32
    %c0_i32_1 = arith.constant 0 : i32
    return %c0_i32, %c0_i32_0 : i32, i32
  }
  func.func @transform_4(%arg0: i32) -> (i32, i32) {
    %c0_i32 = arith.constant 0 : i32
    %c0_i32_0 = arith.constant 0 : i32
    %c0_i32_1 = arith.constant 0 : i32
    return %c0_i32, %c0_i32_0 : i32, i32
  }
  func.func @transform_5(%arg0: i32) -> (i32, i32) {
    %c0_i32 = arith.constant 0 : i32
    %c0_i32_0 = arith.constant 0 : i32
    %c0_i32_1 = arith.constant 0 : i32
    return %c0_i32, %c0_i32_0 : i32, i32
  }
  func.func @transform_6(%arg0: i32) -> (i32, i32) {
    %c0_i32 = arith.constant 0 : i32
    %c0_i32_0 = arith.constant 0 : i32
    %c0_i32_1 = arith.constant 0 : i32
    return %c0_i32, %c0_i32_0 : i32, i32
  }
  func.func @transform_7(%arg0: i32) -> (i32, i32) {
    %c0_i32 = arith.constant 0 : i32
    %c0_i32_0 = arith.constant 0 : i32
    return %c0_i32, %arg0 : i32, i32
  }
}

</mosaic_0001>

<llo_original>
// kernel: mlp_forward.1
$region0: #{mlp_forward.1}
  #allocation0 [shape = 'u32[]', space=smem, size = 0x4, offset = 0x4, fixed_abs, tag = 'smem constant byte address 0x4 - core index']
  #allocation1 [shape = 'u32[144,128]{1,0:T(1,128)}', space=vmem, size = 0x12000, scoped, tag = 'internal scratch']
  #allocation2 [shape = 'f32[1,1]{1,0:T(1,128)S(1)}', space=vmem, size = 0x200, scoped, tag = 'scoped memory for mlp_forward.1']
  %s0 = inlined_call_operand.vmem [shape: f32[2,128], index: 0, kind: input, shape index: {}]
  %s1 = inlined_call_operand.vmem [shape: f32[16,2], index: 1, kind: input, shape index: {}]
  %s2 = inlined_call_operand.vmem [shape: f32[16,1], index: 2, kind: input, shape index: {}]
  %s3 = inlined_call_operand.vmem [shape: f32[16,16], index: 3, kind: input, shape index: {}]
  %s4 = inlined_call_operand.vmem [shape: f32[16,1], index: 4, kind: input, shape index: {}]
  %s5 = inlined_call_operand.vmem [shape: f32[16,1], index: 5, kind: input, shape index: {}]
  %s6 = inlined_call_operand.<no memory space> [shape: f32[1,1], index: 6, kind: input, shape index: {}]
  %s7 = inlined_call_operand.vmem [shape: f32[1,128], index: 7, kind: output, shape index: {}]
  %s8 = sld [smem:[#allocation0]]
  $region38: #{mlp_forward.1} parent=0
    _
  %s10 = ssub.s32 1, %s8
  %s11 = scalar_select 0, %s10, %s8
  %v12 = vstv %s6
  %13 = vst [vmem:[#allocation2] sm:$0x1] %v12
  // Predicated region
  $region2: #{mlp_forward.1} parent=0 // pred_check
    _
  $region3: #{mlp_forward.1} parent=0 // pred_check_branch
    %15 = sbr.rel (0) target = $region5
  $region4: #{mlp_forward.1} parent=0 // pred_region
    _
  $region5: #{mlp_forward.1} parent=0 // pred_fallthru
    _
  // Predicated region
  $region6: #{mlp_forward.1} parent=0 // pred_check
    _
  $region7: #{mlp_forward.1} parent=0 // pred_check_branch
    %17 = sbr.rel (0) target = $region9
  $region8: #{mlp_forward.1} parent=0 // pred_region
    _
  $region9: #{mlp_forward.1} parent=0 // pred_fallthru
    _
  // Predicated region
  $region10: #{mlp_forward.1} parent=0 // pred_check
    _
  $region11: #{mlp_forward.1} parent=0 // pred_check_branch
    %19 = sbr.rel (0) target = $region13
  $region12: #{mlp_forward.1} parent=0 // pred_region
    _
  $region13: #{mlp_forward.1} parent=0 // pred_fallthru
    _
  // Predicated region
  $region14: #{mlp_forward.1} parent=0 // pred_check
    _
  $region15: #{mlp_forward.1} parent=0 // pred_check_branch
    %21 = sbr.rel (0) target = $region17
  $region16: #{mlp_forward.1} parent=0 // pred_region
    _
  $region17: #{mlp_forward.1} parent=0 // pred_fallthru
    _
  // Predicated region
  $region18: #{mlp_forward.1} parent=0 // pred_check
    _
  $region19: #{mlp_forward.1} parent=0 // pred_check_branch
    %23 = sbr.rel (0) target = $region21
  $region20: #{mlp_forward.1} parent=0 // pred_region
    _
  $region21: #{mlp_forward.1} parent=0 // pred_fallthru
    _
  // Predicated region
  $region22: #{mlp_forward.1} parent=0 // pred_check
    _
  $region23: #{mlp_forward.1} parent=0 // pred_check_branch
    %25 = sbr.rel (0) target = $region25
  $region24: #{mlp_forward.1} parent=0 // pred_region
    _
  $region25: #{mlp_forward.1} parent=0 // pred_fallthru
    _
  // Predicated region
  $region26: #{mlp_forward.1} parent=0 // pred_check
    _
  $region27: #{mlp_forward.1} parent=0 // pred_check_branch
    %27 = sbr.rel (0) target = $region29
  $region28: #{mlp_forward.1} parent=0 // pred_region
    _
  $region29: #{mlp_forward.1} parent=0 // pred_fallthru
    _
  %v28 = vld [vmem:[%s1] sm:$0xff]
  %v29 = vld [vmem:[%s1 + $0x8] sm:$0xff]
  %v30 = vld [vmem:[%s2] sm:$0xff]
  %v31 = vld [vmem:[%s2 + $0x8] sm:$0xff]
  %v32 = vld [vmem:[%s3] sm:$0xff]
  %v33 = vld [vmem:[%s3 + $0x8] sm:$0xff]
  %v34 = vld [vmem:[%s4] sm:$0xff]
  %v35 = vld [vmem:[%s4 + $0x8] sm:$0xff]
  %v36 = vld [vmem:[%s5] sm:$0xff]
  %v37 = vld [vmem:[%s5 + $0x8] sm:$0xff]
  %v38 = vld [vmem:[#allocation2] sm:$0x1]
  %v39 = vld [vmem:[%s0] sm:$0x3]
  %41 = vset.pattern.permute.xlu0 0
  %42 = vperm.xlu0 %41, %v28
  %v43 = vpop.permute.xlu0 %42
  %46 = vset.pattern.permute.xlu0 0
  %47 = vperm.xlu0 %46, %v29
  %v48 = vpop.permute.xlu0 %47
  %v50 = vlaneseq
  %v51 = vshrl.u32 %v50, 7
  %v52 = vsub.s32 0, %v51
  %v53 = vrot.slane %v39, %v52
  %v54 = vmul.f32 %v43, %v53
  %v55 = vmul.f32 %v48, %v53
  %56 = vset.pattern.permute.xlu0 1
  %57 = vperm.xlu0 %56, %v28
  %v58 = vpop.permute.xlu0 %57
  %60 = vset.pattern.permute.xlu0 1
  %61 = vperm.xlu0 %60, %v29
  %v62 = vpop.permute.xlu0 %61
  %v64 = vlaneseq
  %v65 = vshrl.u32 %v64, 7
  %v66 = vsub.s32 1, %v65
  %v67 = vrot.slane %v39, %v66
  %v68 = vmul.f32 %v58, %v67
  %v69 = vmul.f32 %v62, %v67
  %v70 = vadd.f32 %v54, %v68
  %v71 = vadd.f32 %v55, %v69
  %73 = vset.pattern.permute.xlu0 0
  %74 = vperm.xlu0 %73, %v30
  %v75 = vpop.permute.xlu0 %74
  %78 = vset.pattern.permute.xlu0 0
  %79 = vperm.xlu0 %78, %v31
  %v80 = vpop.permute.xlu0 %79
  %v82 = vadd.f32 %v70, %v75
  %v83 = vadd.f32 %v71, %v80
  %v84 = vmax.f32 %v82, 0.0
  %v85 = vmax.f32 %v83, 0.0
  %87 = vset.pattern.permute.xlu0 0
  %88 = vperm.xlu0 %87, %v34
  %v89 = vpop.permute.xlu0 %88
  %92 = vset.pattern.permute.xlu0 0
  %93 = vperm.xlu0 %92, %v35
  %v94 = vpop.permute.xlu0 %93
  %vm96 = vcmask 130048
  %v98 = vsel %vm96, %v32, 0
  %v101 = vsel %vm96, %v33, 0
  %103 = vmatprep.subr.mxu0 0.0
  %104 = vmatpush1.msra.mxu0 0.0
  %105 = vmatprep.subr.mxu0 0.0
  %106 = vmatpush1.msra.mxu0 0.0
  %107 = vmatprep.subr.mxu0 0.0
  %108 = vmatpush1.msra.mxu0 0.0
  %109 = vmatprep.subr.mxu0 0.0
  %110 = vmatpush1.msra.mxu0 0.0
  %111 = vmatprep.subr.mxu0 0.0
  %112 = vmatpush1.msra.mxu0 0.0
  %113 = vmatprep.subr.mxu0 0.0
  %114 = vmatpush1.msra.mxu0 0.0
  %115 = vmatprep.subr.mxu0 0.0
  %116 = vmatpush1.msra.mxu0 0.0
  %117 = vmatprep.subr.mxu0 0.0
  %118 = vmatpush1.msra.mxu0 0.0
  %119 = vmatprep.subr.mxu0 0.0
  %120 = vmatpush1.msra.mxu0 0.0
  %121 = vmatprep.subr.mxu0 0.0
  %122 = vmatpush1.msra.mxu0 0.0
  %123 = vmatprep.subr.mxu0 0.0
  %124 = vmatpush1.msra.mxu0 0.0
  %125 = vmatprep.subr.mxu0 0.0
  %126 = vmatpush1.msra.mxu0 0.0
  %127 = vmatprep.subr.mxu0 0.0
  %128 = vmatpush1.msra.mxu0 0.0
  %129 = vmatprep.subr.mxu0 0.0
  %130 = vmatpush1.msra.mxu0 0.0
  %131 = vmatprep.subr.mxu0 0.0
  %v132 = vand.u32 %v85, 4294901760
  %133 = vmatpush1.msra.mxu0 %v132
  %134 = vmatprep.subr.mxu0 0.0
  %v135 = vand.u32 %v84, 4294901760
  %136 = vmatpush1.msra.mxu0 %v135
  %137 = vmatprep.subr.mxu0 0.0
  %138 = vmatpush2.msra.mxu0 0.0
  %139 = vmatprep.subr.mxu0 0.0
  %140 = vmatpush2.msra.mxu0 0.0
  %141 = vmatprep.subr.mxu0 0.0
  %142 = vmatpush2.msra.mxu0 0.0
  %143 = vmatprep.subr.mxu0 0.0
  %144 = vmatpush2.msra.mxu0 0.0
  %145 = vmatprep.subr.mxu0 0.0
  %146 = vmatpush2.msra.mxu0 0.0
  %147 = vmatprep.subr.mxu0 0.0
  %148 = vmatpush2.msra.mxu0 0.0
  %149 = vmatprep.subr.mxu0 0.0
  %150 = vmatpush2.msra.mxu0 0.0
  %151 = vmatprep.subr.mxu0 0.0
  %152 = vmatpush2.msra.mxu0 0.0
  %153 = vmatprep.subr.mxu0 0.0
  %154 = vmatpush2.msra.mxu0 0.0
  %155 = vmatprep.subr.mxu0 0.0
  %156 = vmatpush2.msra.mxu0 0.0
  %157 = vmatprep.subr.mxu0 0.0
  %158 = vmatpush2.msra.mxu0 0.0
  %159 = vmatprep.subr.mxu0 0.0
  %160 = vmatpush2.msra.mxu0 0.0
  %161 = vmatprep.subr.mxu0 0.0
  %162 = vmatpush2.msra.mxu0 0.0
  %163 = vmatprep.subr.mxu0 0.0
  %164 = vmatpush2.msra.mxu0 0.0
  %165 = vmatprep.subr.mxu0 0.0
  %166 = vmatpush2.msra.mxu0 0.0
  %167 = vmatprep.subr.mxu0 0.0
  %168 = vmatpush2.msra.mxu0 0.0
  %169 = vmatprep.mubr.f32.mxu0 0.0
  %v170 = vand.u32 %v98, 4294901760
  %v171 = vsub.f32 %v98, %v170
  %v172 = vand.u32 %v171, 4294901760
  %v173 = vsub.f32 %v171, %v172
  %v174 = vand.u32 %v173, 4294901760
  %175 = vmatmul.mubr.f32.gmra.mxu0 %v174
  %v176 = vpop.f32.mrf.mxu0
  %v177 = vadd.f32 %v89, %v176
  %v178 = vpop.f32.mrf.mxu0
  %179 = vmatprep.mubr.f32.mxu0 0.0
  %v180 = vand.u32 %v101, 4294901760
  %v181 = vsub.f32 %v101, %v180
  %v182 = vand.u32 %v181, 4294901760
  %v183 = vsub.f32 %v181, %v182
  %v184 = vand.u32 %v183, 4294901760
  %185 = vmatmul.mubr.f32.gmra.mxu0 %v184
  %v186 = vpop.f32.mrf.mxu0
  %v187 = vadd.f32 %v94, %v186
  %v188 = vpop.f32.mrf.mxu0
  %189 = vdwg.mxu0
  %190 = vmatprep.subr.mxu0 0.0
  %191 = vmatpush1.msra.mxu0 0.0
  %192 = vmatprep.subr.mxu0 0.0
  %193 = vmatpush1.msra.mxu0 0.0
  %194 = vmatprep.subr.mxu0 0.0
  %195 = vmatpush1.msra.mxu0 0.0
  %196 = vmatprep.subr.mxu0 0.0
  %197 = vmatpush1.msra.mxu0 0.0
  %198 = vmatprep.subr.mxu0 0.0
  %199 = vmatpush1.msra.mxu0 0.0
  %200 = vmatprep.subr.mxu0 0.0
  %201 = vmatpush1.msra.mxu0 0.0
  %202 = vmatprep.subr.mxu0 0.0
  %203 = vmatpush1.msra.mxu0 0.0
  %204 = vmatprep.subr.mxu0 0.0
  %205 = vmatpush1.msra.mxu0 0.0
  %206 = vmatprep.subr.mxu0 0.0
  %207 = vmatpush1.msra.mxu0 0.0
  %208 = vmatprep.subr.mxu0 0.0
  %209 = vmatpush1.msra.mxu0 0.0
  %210 = vmatprep.subr.mxu0 0.0
  %211 = vmatpush1.msra.mxu0 0.0
  %212 = vmatprep.subr.mxu0 0.0
  %213 = vmatpush1.msra.mxu0 0.0
  %214 = vmatprep.subr.mxu0 0.0
  %215 = vmatpush1.msra.mxu0 0.0
  %216 = vmatprep.subr.mxu0 0.0
  %217 = vmatpush1.msra.mxu0 0.0
  %218 = vmatprep.subr.mxu0 0.0
  %v219 = vand.u32 %v85, 4294901760
  %v220 = vsub.f32 %v85, %v219
  %v221 = vand.u32 %v220, 4294901760
  %v222 = vsub.f32 %v220, %v221
  %v223 = vand.u32 %v222, 4294901760
  %224 = vmatpush1.msra.mxu0 %v223
  %225 = vmatprep.subr.mxu0 0.0
  %v226 = vand.u32 %v84, 4294901760
  %v227 = vsub.f32 %v84, %v226
  %v228 = vand.u32 %v227, 4294901760
  %v229 = vsub.f32 %v227, %v228
  %v230 = vand.u32 %v229, 4294901760
  %231 = vmatpush1.msra.mxu0 %v230
  %232 = vmatprep.subr.mxu0 0.0
  %233 = vmatpush2.msra.mxu0 0.0
  %234 = vmatprep.subr.mxu0 0.0
  %235 = vmatpush2.msra.mxu0 0.0
  %236 = vmatprep.subr.mxu0 0.0
  %237 = vmatpush2.msra.mxu0 0.0
  %238 = vmatprep.subr.mxu0 0.0
  %239 = vmatpush2.msra.mxu0 0.0
  %240 = vmatprep.subr.mxu0 0.0
  %241 = vmatpush2.msra.mxu0 0.0
  %242 = vmatprep.subr.mxu0 0.0
  %243 = vmatpush2.msra.mxu0 0.0
  %244 = vmatprep.subr.mxu0 0.0
  %245 = vmatpush2.msra.mxu0 0.0
  %246 = vmatprep.subr.mxu0 0.0
  %247 = vmatpush2.msra.mxu0 0.0
  %248 = vmatprep.subr.mxu0 0.0
  %249 = vmatpush2.msra.mxu0 0.0
  %250 = vmatprep.subr.mxu0 0.0
  %251 = vmatpush2.msra.mxu0 0.0
  %252 = vmatprep.subr.mxu0 0.0
  %253 = vmatpush2.msra.mxu0 0.0
  %254 = vmatprep.subr.mxu0 0.0
  %255 = vmatpush2.msra.mxu0 0.0
  %256 = vmatprep.subr.mxu0 0.0
  %257 = vmatpush2.msra.mxu0 0.0
  %258 = vmatprep.subr.mxu0 0.0
  %259 = vmatpush2.msra.mxu0 0.0
  %260 = vmatprep.subr.mxu0 0.0
  %261 = vmatpush2.msra.mxu0 0.0
  %262 = vmatprep.subr.mxu0 0.0
  %263 = vmatpush2.msra.mxu0 0.0
  %264 = vmatprep.mubr.f32.mxu0 0.0
  %v265 = vand.u32 %v98, 4294901760
  %266 = vmatmul.mubr.f32.gmra.mxu0 %v265
  %v267 = vpop.f32.mrf.mxu0
  %v268 = vadd.f32 %v177, %v267
  %v269 = vpop.f32.mrf.mxu0
  %270 = vmatprep.mubr.f32.mxu0 0.0
  %v271 = vand.u32 %v101, 4294901760
  %272 = vmatmul.mubr.f32.gmra.mxu0 %v271
  %v273 = vpop.f32.mrf.mxu0
  %v274 = vadd.f32 %v187, %v273
  %v275 = vpop.f32.mrf.mxu0
  %276 = vdwg.mxu0
  %277 = vmatprep.subr.mxu0 0.0
  %278 = vmatpush1.msra.mxu0 0.0
  %279 = vmatprep.subr.mxu0 0.0
  %280 = vmatpush1.msra.mxu0 0.0
  %281 = vmatprep.subr.mxu0 0.0
  %282 = vmatpush1.msra.mxu0 0.0
  %283 = vmatprep.subr.mxu0 0.0
  %284 = vmatpush1.msra.mxu0 0.0
  %285 = vmatprep.subr.mxu0 0.0
  %286 = vmatpush1.msra.mxu0 0.0
  %287 = vmatprep.subr.mxu0 0.0
  %288 = vmatpush1.msra.mxu0 0.0
  %289 = vmatprep.subr.mxu0 0.0
  %290 = vmatpush1.msra.mxu0 0.0
  %291 = vmatprep.subr.mxu0 0.0
  %292 = vmatpush1.msra.mxu0 0.0
  %293 = vmatprep.subr.mxu0 0.0
  %294 = vmatpush1.msra.mxu0 0.0
  %295 = vmatprep.subr.mxu0 0.0
  %296 = vmatpush1.msra.mxu0 0.0
  %297 = vmatprep.subr.mxu0 0.0
  %298 = vmatpush1.msra.mxu0 0.0
  %299 = vmatprep.subr.mxu0 0.0
  %300 = vmatpush1.msra.mxu0 0.0
  %301 = vmatprep.subr.mxu0 0.0
  %302 = vmatpush1.msra.mxu0 0.0
  %303 = vmatprep.subr.mxu0 0.0
  %304 = vmatpush1.msra.mxu0 0.0
  %305 = vmatprep.subr.mxu0 0.0
  %v306 = vand.u32 %v85, 4294901760
  %v307 = vsub.f32 %v85, %v306
  %308 = vmatpush1.msra.mxu0 %v307
  %309 = vmatprep.subr.mxu0 0.0
  %v310 = vand.u32 %v84, 4294901760
  %v311 = vsub.f32 %v84, %v310
  %312 = vmatpush1.msra.mxu0 %v311
  %313 = vmatprep.subr.mxu0 0.0
  %314 = vmatpush2.msra.mxu0 0.0
  %315 = vmatprep.subr.mxu0 0.0
  %316 = vmatpush2.msra.mxu0 0.0
  %317 = vmatprep.subr.mxu0 0.0
  %318 = vmatpush2.msra.mxu0 0.0
  %319 = vmatprep.subr.mxu0 0.0
  %320 = vmatpush2.msra.mxu0 0.0
  %321 = vmatprep.subr.mxu0 0.0
  %322 = vmatpush2.msra.mxu0 0.0
  %323 = vmatprep.subr.mxu0 0.0
  %324 = vmatpush2.msra.mxu0 0.0
  %325 = vmatprep.subr.mxu0 0.0
  %326 = vmatpush2.msra.mxu0 0.0
  %327 = vmatprep.subr.mxu0 0.0
  %328 = vmatpush2.msra.mxu0 0.0
  %329 = vmatprep.subr.mxu0 0.0
  %330 = vmatpush2.msra.mxu0 0.0
  %331 = vmatprep.subr.mxu0 0.0
  %332 = vmatpush2.msra.mxu0 0.0
  %333 = vmatprep.subr.mxu0 0.0
  %334 = vmatpush2.msra.mxu0 0.0
  %335 = vmatprep.subr.mxu0 0.0
  %336 = vmatpush2.msra.mxu0 0.0
  %337 = vmatprep.subr.mxu0 0.0
  %338 = vmatpush2.msra.mxu0 0.0
  %339 = vmatprep.subr.mxu0 0.0
  %340 = vmatpush2.msra.mxu0 0.0
  %341 = vmatprep.subr.mxu0 0.0
  %342 = vmatpush2.msra.mxu0 0.0
  %343 = vmatprep.subr.mxu0 0.0
  %344 = vmatpush2.msra.mxu0 0.0
  %345 = vmatprep.mubr.f32.mxu0 0.0
  %v346 = vand.u32 %v98, 4294901760
  %v347 = vsub.f32 %v98, %v346
  %348 = vmatmul.mubr.f32.gmra.mxu0 %v347
  %v349 = vpop.f32.mrf.mxu0
  %v350 = vadd.f32 %v268, %v349
  %v351 = vpop.f32.mrf.mxu0
  %352 = vmatprep.mubr.f32.mxu0 0.0
  %v353 = vand.u32 %v101, 4294901760
  %v354 = vsub.f32 %v101, %v353
  %355 = vmatmul.mubr.f32.gmra.mxu0 %v354
  %v356 = vpop.f32.mrf.mxu0
  %v357 = vadd.f32 %v274, %v356
  %v358 = vpop.f32.mrf.mxu0
  %359 = vdwg.mxu0
  %360 = vmatprep.subr.mxu0 0.0
  %361 = vmatpush1.msra.mxu0 0.0
  %362 = vmatprep.subr.mxu0 0.0
  %363 = vmatpush1.msra.mxu0 0.0
  %364 = vmatprep.subr.mxu0 0.0
  %365 = vmatpush1.msra.mxu0 0.0
  %366 = vmatprep.subr.mxu0 0.0
  %367 = vmatpush1.msra.mxu0 0.0
  %368 = vmatprep.subr.mxu0 0.0
  %369 = vmatpush1.msra.mxu0 0.0
  %370 = vmatprep.subr.mxu0 0.0
  %371 = vmatpush1.msra.mxu0 0.0
  %372 = vmatprep.subr.mxu0 0.0
  %373 = vmatpush1.msra.mxu0 0.0
  %374 = vmatprep.subr.mxu0 0.0
  %375 = vmatpush1.msra.mxu0 0.0
  %376 = vmatprep.subr.mxu0 0.0
  %377 = vmatpush1.msra.mxu0 0.0
  %378 = vmatprep.subr.mxu0 0.0
  %379 = vmatpush1.msra.mxu0 0.0
  %380 = vmatprep.subr.mxu0 0.0
  %381 = vmatpush1.msra.mxu0 0.0
  %382 = vmatprep.subr.mxu0 0.0
  %383 = vmatpush1.msra.mxu0 0.0
  %384 = vmatprep.subr.mxu0 0.0
  %385 = vmatpush1.msra.mxu0 0.0
  %386 = vmatprep.subr.mxu0 0.0
  %387 = vmatpush1.msra.mxu0 0.0
  %388 = vmatprep.subr.mxu0 0.0
  %v389 = vand.u32 %v85, 4294901760
  %390 = vmatpush1.msra.mxu0 %v389
  %391 = vmatprep.subr.mxu0 0.0
  %v392 = vand.u32 %v84, 4294901760
  %393 = vmatpush1.msra.mxu0 %v392
  %394 = vmatprep.subr.mxu0 0.0
  %395 = vmatpush2.msra.mxu0 0.0
  %396 = vmatprep.subr.mxu0 0.0
  %397 = vmatpush2.msra.mxu0 0.0
  %398 = vmatprep.subr.mxu0 0.0
  %399 = vmatpush2.msra.mxu0 0.0
  %400 = vmatprep.subr.mxu0 0.0
  %401 = vmatpush2.msra.mxu0 0.0
  %402 = vmatprep.subr.mxu0 0.0
  %403 = vmatpush2.msra.mxu0 0.0
  %404 = vmatprep.subr.mxu0 0.0
  %405 = vmatpush2.msra.mxu0 0.0
  %406 = vmatprep.subr.mxu0 0.0
  %407 = vmatpush2.msra.mxu0 0.0
  %408 = vmatprep.subr.mxu0 0.0
  %409 = vmatpush2.msra.mxu0 0.0
  %410 = vmatprep.subr.mxu0 0.0
  %411 = vmatpush2.msra.mxu0 0.0
  %412 = vmatprep.subr.mxu0 0.0
  %413 = vmatpush2.msra.mxu0 0.0
  %414 = vmatprep.subr.mxu0 0.0
  %415 = vmatpush2.msra.mxu0 0.0
  %416 = vmatprep.subr.mxu0 0.0
  %417 = vmatpush2.msra.mxu0 0.0
  %418 = vmatprep.subr.mxu0 0.0
  %419 = vmatpush2.msra.mxu0 0.0
  %420 = vmatprep.subr.mxu0 0.0
  %421 = vmatpush2.msra.mxu0 0.0
  %422 = vmatprep.subr.mxu0 0.0
  %423 = vmatpush2.msra.mxu0 0.0
  %424 = vmatprep.subr.mxu0 0.0
  %425 = vmatpush2.msra.mxu0 0.0
  %426 = vmatprep.mubr.f32.mxu0 0.0
  %v427 = vand.u32 %v98, 4294901760
  %v428 = vsub.f32 %v98, %v427
  %v429 = vand.u32 %v428, 4294901760
  %430 = vmatmul.mubr.f32.gmra.mxu0 %v429
  %v431 = vpop.f32.mrf.mxu0
  %v432 = vadd.f32 %v350, %v431
  %v433 = vpop.f32.mrf.mxu0
  %434 = vmatprep.mubr.f32.mxu0 0.0
  %v435 = vand.u32 %v101, 4294901760
  %v436 = vsub.f32 %v101, %v435
  %v437 = vand.u32 %v436, 4294901760
  %438 = vmatmul.mubr.f32.gmra.mxu0 %v437
  %v439 = vpop.f32.mrf.mxu0
  %v440 = vadd.f32 %v357, %v439
  %v441 = vpop.f32.mrf.mxu0
  %442 = vdwg.mxu0
  %443 = vmatprep.subr.mxu0 0.0
  %444 = vmatpush1.msra.mxu0 0.0
  %445 = vmatprep.subr.mxu0 0.0
  %446 = vmatpush1.msra.mxu0 0.0
  %447 = vmatprep.subr.mxu0 0.0
  %448 = vmatpush1.msra.mxu0 0.0
  %449 = vmatprep.subr.mxu0 0.0
  %450 = vmatpush1.msra.mxu0 0.0
  %451 = vmatprep.subr.mxu0 0.0
  %452 = vmatpush1.msra.mxu0 0.0
  %453 = vmatprep.subr.mxu0 0.0
  %454 = vmatpush1.msra.mxu0 0.0
  %455 = vmatprep.subr.mxu0 0.0
  %456 = vmatpush1.msra.mxu0 0.0
  %457 = vmatprep.subr.mxu0 0.0
  %458 = vmatpush1.msra.mxu0 0.0
  %459 = vmatprep.subr.mxu0 0.0
  %460 = vmatpush1.msra.mxu0 0.0
  %461 = vmatprep.subr.mxu0 0.0
  %462 = vmatpush1.msra.mxu0 0.0
  %463 = vmatprep.subr.mxu0 0.0
  %464 = vmatpush1.msra.mxu0 0.0
  %465 = vmatprep.subr.mxu0 0.0
  %466 = vmatpush1.msra.mxu0 0.0
  %467 = vmatprep.subr.mxu0 0.0
  %468 = vmatpush1.msra.mxu0 0.0
  %469 = vmatprep.subr.mxu0 0.0
  %470 = vmatpush1.msra.mxu0 0.0
  %471 = vmatprep.subr.mxu0 0.0
  %v472 = vand.u32 %v85, 4294901760
  %v473 = vsub.f32 %v85, %v472
  %v474 = vand.u32 %v473, 4294901760
  %475 = vmatpush1.msra.mxu0 %v474
  %476 = vmatprep.subr.mxu0 0.0
  %v477 = vand.u32 %v84, 4294901760
  %v478 = vsub.f32 %v84, %v477
  %v479 = vand.u32 %v478, 4294901760
  %480 = vmatpush1.msra.mxu0 %v479
  %481 = vmatprep.subr.mxu0 0.0
  %482 = vmatpush2.msra.mxu0 0.0
  %483 = vmatprep.subr.mxu0 0.0
  %484 = vmatpush2.msra.mxu0 0.0
  %485 = vmatprep.subr.mxu0 0.0
  %486 = vmatpush2.msra.mxu0 0.0
  %487 = vmatprep.subr.mxu0 0.0
  %488 = vmatpush2.msra.mxu0 0.0
  %489 = vmatprep.subr.mxu0 0.0
  %490 = vmatpush2.msra.mxu0 0.0
  %491 = vmatprep.subr.mxu0 0.0
  %492 = vmatpush2.msra.mxu0 0.0
  %493 = vmatprep.subr.mxu0 0.0
  %494 = vmatpush2.msra.mxu0 0.0
  %495 = vmatprep.subr.mxu0 0.0
  %496 = vmatpush2.msra.mxu0 0.0
  %497 = vmatprep.subr.mxu0 0.0
  %498 = vmatpush2.msra.mxu0 0.0
  %499 = vmatprep.subr.mxu0 0.0
  %500 = vmatpush2.msra.mxu0 0.0
  %501 = vmatprep.subr.mxu0 0.0
  %502 = vmatpush2.msra.mxu0 0.0
  %503 = vmatprep.subr.mxu0 0.0
  %504 = vmatpush2.msra.mxu0 0.0
  %505 = vmatprep.subr.mxu0 0.0
  %506 = vmatpush2.msra.mxu0 0.0
  %507 = vmatprep.subr.mxu0 0.0
  %508 = vmatpush2.msra.mxu0 0.0
  %509 = vmatprep.subr.mxu0 0.0
  %510 = vmatpush2.msra.mxu0 0.0
  %511 = vmatprep.subr.mxu0 0.0
  %512 = vmatpush2.msra.mxu0 0.0
  %513 = vmatprep.mubr.f32.mxu0 0.0
  %v514 = vand.u32 %v98, 4294901760
  %515 = vmatmul.mubr.f32.gmra.mxu0 %v514
  %v516 = vpop.f32.mrf.mxu0
  %v517 = vadd.f32 %v432, %v516
  %v518 = vpop.f32.mrf.mxu0
  %519 = vmatprep.mubr.f32.mxu0 0.0
  %v520 = vand.u32 %v101, 4294901760
  %521 = vmatmul.mubr.f32.gmra.mxu0 %v520
  %v522 = vpop.f32.mrf.mxu0
  %v523 = vadd.f32 %v440, %v522
  %v524 = vpop.f32.mrf.mxu0
  %525 = vdwg.mxu0
  %526 = vmatprep.subr.mxu0 0.0
  %527 = vmatpush1.msra.mxu0 0.0
  %528 = vmatprep.subr.mxu0 0.0
  %529 = vmatpush1.msra.mxu0 0.0
  %530 = vmatprep.subr.mxu0 0.0
  %531 = vmatpush1.msra.mxu0 0.0
  %532 = vmatprep.subr.mxu0 0.0
  %533 = vmatpush1.msra.mxu0 0.0
  %534 = vmatprep.subr.mxu0 0.0
  %535 = vmatpush1.msra.mxu0 0.0
  %536 = vmatprep.subr.mxu0 0.0
  %537 = vmatpush1.msra.mxu0 0.0
  %538 = vmatprep.subr.mxu0 0.0
  %539 = vmatpush1.msra.mxu0 0.0
  %540 = vmatprep.subr.mxu0 0.0
  %541 = vmatpush1.msra.mxu0 0.0
  %542 = vmatprep.subr.mxu0 0.0
  %543 = vmatpush1.msra.mxu0 0.0
  %544 = vmatprep.subr.mxu0 0.0
  %545 = vmatpush1.msra.mxu0 0.0
  %546 = vmatprep.subr.mxu0 0.0
  %547 = vmatpush1.msra.mxu0 0.0
  %548 = vmatprep.subr.mxu0 0.0
  %549 = vmatpush1.msra.mxu0 0.0
  %550 = vmatprep.subr.mxu0 0.0
  %551 = vmatpush1.msra.mxu0 0.0
  %552 = vmatprep.subr.mxu0 0.0
  %553 = vmatpush1.msra.mxu0 0.0
  %554 = vmatprep.subr.mxu0 0.0
  %v555 = vand.u32 %v85, 4294901760
  %556 = vmatpush1.msra.mxu0 %v555
  %557 = vmatprep.subr.mxu0 0.0
  %v558 = vand.u32 %v84, 4294901760
  %559 = vmatpush1.msra.mxu0 %v558
  %560 = vmatprep.subr.mxu0 0.0
  %561 = vmatpush2.msra.mxu0 0.0
  %562 = vmatprep.subr.mxu0 0.0
  %563 = vmatpush2.msra.mxu0 0.0
  %564 = vmatprep.subr.mxu0 0.0
  %565 = vmatpush2.msra.mxu0 0.0
  %566 = vmatprep.subr.mxu0 0.0
  %567 = vmatpush2.msra.mxu0 0.0
  %568 = vmatprep.subr.mxu0 0.0
  %569 = vmatpush2.msra.mxu0 0.0
  %570 = vmatprep.subr.mxu0 0.0
  %571 = vmatpush2.msra.mxu0 0.0
  %572 = vmatprep.subr.mxu0 0.0
  %573 = vmatpush2.msra.mxu0 0.0
  %574 = vmatprep.subr.mxu0 0.0
  %575 = vmatpush2.msra.mxu0 0.0
  %576 = vmatprep.subr.mxu0 0.0
  %577 = vmatpush2.msra.mxu0 0.0
  %578 = vmatprep.subr.mxu0 0.0
  %579 = vmatpush2.msra.mxu0 0.0
  %580 = vmatprep.subr.mxu0 0.0
  %581 = vmatpush2.msra.mxu0 0.0
  %582 = vmatprep.subr.mxu0 0.0
  %583 = vmatpush2.msra.mxu0 0.0
  %584 = vmatprep.subr.mxu0 0.0
  %585 = vmatpush2.msra.mxu0 0.0
  %586 = vmatprep.subr.mxu0 0.0
  %587 = vmatpush2.msra.mxu0 0.0
  %588 = vmatprep.subr.mxu0 0.0
  %589 = vmatpush2.msra.mxu0 0.0
  %590 = vmatprep.subr.mxu0 0.0
  %591 = vmatpush2.msra.mxu0 0.0
  %592 = vmatprep.mubr.f32.mxu0 0.0
  %v593 = vand.u32 %v98, 4294901760
  %594 = vmatmul.mubr.f32.gmra.mxu0 %v593
  %v595 = vpop.f32.mrf.mxu0
  %v596 = vadd.f32 %v517, %v595
  %v597 = vpop.f32.mrf.mxu0
  %598 = vmatprep.mubr.f32.mxu0 0.0
  %v599 = vand.u32 %v101, 4294901760
  %600 = vmatmul.mubr.f32.gmra.mxu0 %v599
  %v601 = vpop.f32.mrf.mxu0
  %v602 = vadd.f32 %v523, %v601
  %v603 = vpop.f32.mrf.mxu0
  %604 = vdwg.mxu0
  %v605 = vmax.f32 %v596, 0.0
  %v606 = vmax.f32 %v602, 0.0
  %608 = vset.pattern.permute.xlu0 0
  %609 = vperm.xlu0 %608, %v36
  %v610 = vpop.permute.xlu0 %609
  %613 = vset.pattern.permute.xlu0 0
  %614 = vperm.xlu0 %613, %v37
  %v615 = vpop.permute.xlu0 %614
  %v617 = vmul.f32 %v610, %v605
  %v618 = vmul.f32 %v615, %v606
  %v619 = vadd.f32 %v617, %v618
  %v620 = vrot.slane %v619, 4
  %v621 = vadd.f32 %v619, %v620
  %v622 = vrot.slane %v621, 2
  %v623 = vadd.f32 %v621, %v622
  %v624 = vrot.slane %v623, 1
  %v625 = vadd.f32 %v623, %v624
  %627 = vset.pattern.permute.xlu0 0
  %628 = vperm.xlu0 %627, %v38
  %v629 = vpop.permute.xlu0 %628
  %v631 = vlaneseq
  %v632 = vshrl.u32 %v631, 7
  %v633 = vsub.s32 0, %v632
  %v634 = vrot.slane %v629, %v633
  %v635 = vadd.f32 %v625, %v634
  %636 = vst [vmem:[%s7] sm:$0x1] %v635
  // Predicated region
  $region30: #{mlp_forward.1} parent=0 // pred_check
    _
  $region31: #{mlp_forward.1} parent=0 // pred_check_branch
    %638 = sbr.rel (0) target = $region33
  $region32: #{mlp_forward.1} parent=0 // pred_region
    _
  $region33: #{mlp_forward.1} parent=0 // pred_fallthru
    _
  // Predicated region
  $region34: #{mlp_forward.1} parent=0 // pred_check
    _
  $region35: #{mlp_forward.1} parent=0 // pred_check_branch
    %640 = sbr.rel (0) target = $region37
  $region36: #{mlp_forward.1} parent=0 // pred_region
    _
  $region37: #{mlp_forward.1} parent=0 // pred_fallthru
    _

</llo_original>
